<compile_context>
chip_gen: v5e
topology: v5e:2x2
jax: 0.10.0
libtpu: 0.0.40
codegen_flags: <defaults>
</compile_context>

<pallas_src>
import jax
import jax.numpy as jnp
from jax.experimental import pallas as pl
from jax.experimental.pallas import tpu as pltpu


_VMEM_LIMIT = 64 * 1024 * 1024  # explicit scoped-VMEM cap (fits v5e/v6e/v7x)


def _round_up(x, m):
    return ((x + m - 1) // m) * m


def _pick_tile(L, pref):
    """Pad L to a 128 multiple; choose largest tile in {pref,512,256,128} dividing it."""
    Lp = _round_up(max(L, 1), 128)
    for t in (pref, 512, 256, 128):
        if t <= Lp and Lp % t == 0:
            return t, Lp
    return Lp, Lp


def _pad2(a, r, c):
    pr, pc = r - a.shape[0], c - a.shape[1]
    if pr or pc:
        a = jnp.pad(a, ((0, pr), (0, pc)))
    return a


def _pad3(a, b, r, c):
    pb, pr, pc = b - a.shape[0], r - a.shape[1], c - a.shape[2]
    if pb or pr or pc:
        a = jnp.pad(a, ((0, pb), (0, pr), (0, pc)))
    return a


# ----------------------------- projection kernel -----------------------------

def _proj_relu_kernel(x_ref, w_ref, d_ref, out_ref):
    # x_ref: (TL, D)   w_ref: (D, H)   d_ref: (1, H)   out_ref: (TL, H)
    h = jnp.dot(x_ref[...], w_ref[...], preferred_element_type=jnp.float32)
    h = jnp.maximum(h, 0.0) * d_ref[...]          # ReLU then diagonal scale (f32)
    out_ref[...] = h.astype(out_ref.dtype)


def _project(x, w_t, d, *, tile_l, out_dtype):
    B, Lp, Dp = x.shape
    Hp = w_t.shape[1]
    return pl.pallas_call(
        _proj_relu_kernel,
        out_shape=jax.ShapeDtypeStruct((B, Lp, Hp), out_dtype),
        grid_spec=pltpu.PrefetchScalarGridSpec(
            num_scalar_prefetch=0,
            grid=(B, Lp // tile_l),
            in_specs=[
                pl.BlockSpec((pl.Squeezed(), tile_l, Dp), lambda b, i: (b, i, 0)),
                pl.BlockSpec((Dp, Hp), lambda b, i: (0, 0)),  # grid-invariant weights
                pl.BlockSpec((1, Hp), lambda b, i: (0, 0)),   # grid-invariant scale
            ],
            out_specs=pl.BlockSpec((pl.Squeezed(), tile_l, Hp), lambda b, i: (b, i, 0)),
        ),
        compiler_params=pltpu.CompilerParams(
            dimension_semantics=("parallel", "parallel"),
            vmem_limit_bytes=_VMEM_LIMIT,
        ),
    )(x, w_t, d)


# ------------------------------- score kernel --------------------------------

def _score_kernel(h1_ref, h2_ref, out_ref):
    # h1_ref: (TM, H)  h2_ref: (TN, H)  out_ref: (TM, TN)
    # Contract on H of both operands -> MXU consumes the transposed-RHS form
    # natively; no explicit XLU transpose of h2.
    out_ref[...] = jax.lax.dot_general(
        h1_ref[...], h2_ref[...],
        dimension_numbers=(((1,), (1,)), ((), ())),
        preferred_element_type=jnp.float32,
    ).astype(out_ref.dtype)


def _scores(h1, h2, *, tm, tn):
    B, L1p, Hp = h1.shape
    _, L2p, _ = h2.shape
    return pl.pallas_call(
        _score_kernel,
        out_shape=jax.ShapeDtypeStruct((B, L1p, L2p), jnp.float32),
        grid_spec=pltpu.PrefetchScalarGridSpec(
            num_scalar_prefetch=0,
            grid=(B, L1p // tm, L2p // tn),
            in_specs=[
                pl.BlockSpec((pl.Squeezed(), tm, Hp), lambda b, i, j: (b, i, 0)),
                pl.BlockSpec((pl.Squeezed(), tn, Hp), lambda b, i, j: (b, j, 0)),
            ],
            out_specs=pl.BlockSpec((pl.Squeezed(), tm, tn), lambda b, i, j: (b, i, j)),
        ),
        compiler_params=pltpu.CompilerParams(
            dimension_semantics=("parallel", "parallel", "parallel"),
            vmem_limit_bytes=_VMEM_LIMIT,
        ),
    )(h1, h2)


# --------------------------------- wrapper ------------------------------------

def attention_score(x1, x2, w1, w2, linear_final, *,
                    matmul_dtype=jnp.bfloat16, tile_m=512, tile_n=512):
    """
    x1: (B, L1, D1) f32     x2: (B, L2, D2) f32
    w1: (H, D1)  w2: (H, D2)   (PyTorch nn.Linear (out,in) layout, bias=False)
    linear_final: broadcastable to (1, 1, H)  (diagonal scale; (1,1,1) also OK)
    returns: (B, L1, L2) f32 scores
    """
    B, L1, D1 = x1.shape
    B2, L2, D2 = x2.shape
    assert B == B2
    H = w1.shape[0]

    # Lane/sublane-friendly padded sizes; output tiles are lane-dense 128 multiples.
    tm, L1p = _pick_tile(L1, tile_m)
    tn, L2p = _pick_tile(L2, tile_n)
    D1p, D2p, Hp = _round_up(D1, 128), _round_up(D2, 128), _round_up(H, 128)

    x1p = _pad3(x1, B, L1p, D1p).astype(matmul_dtype)
    x2p = _pad3(x2, B, L2p, D2p).astype(matmul_dtype)
    w1t = _pad2(jnp.transpose(w1), D1p, Hp).astype(matmul_dtype)   # (D1p, Hp)
    w2t = _pad2(jnp.transpose(w2), D2p, Hp).astype(matmul_dtype)   # (D2p, Hp)

    d = jnp.broadcast_to(jnp.asarray(linear_final, jnp.float32).reshape(1, -1), (1, H))
    dp = _pad2(d, 1, Hp)                       # scale applied in f32 inside the kernel
    ones = jnp.ones((1, Hp), jnp.float32)

    # Projections computed once (hoisted out of the L1 x L2 score loop).
    h1 = _project(x1p, w1t, ones, tile_l=tm, out_dtype=matmul_dtype)   # (B, L1p, Hp)
    h2d = _project(x2p, w2t, dp, tile_l=tn, out_dtype=matmul_dtype)    # (B, L2p, Hp)

    scores = _scores(h1, h2d, tm=tm, tn=tn)                            # (B, L1p, L2p)
    return scores[:, :L1, :L2]


def attention_score_ref(x1, x2, w1, w2, linear_final):
    h1 = jax.nn.relu(jnp.einsum("bld,hd->blh", x1, w1))
    h2 = jax.nn.relu(jnp.einsum("bld,hd->blh", x2, w2))
    h2 = h2 * jnp.broadcast_to(jnp.asarray(linear_final).reshape(1, 1, -1), h2.shape)
    return jnp.einsum("bih,bjh->bij", h1, h2)


if __name__ == "__main__":
    # Small shapes matching the module contract: batch * len * feature.
    B, L1, L2 = 2, 8, 8
    x1_d, x2_d, hidden = 32, 32, 32

    key = jax.random.PRNGKey(0)
    k1, k2, k3, k4 = jax.random.split(key, 4)

    x1 = jax.random.normal(k1, (B, L1, x1_d), dtype=jnp.float32)
    x2 = jax.random.normal(k2, (B, L2, x2_d), dtype=jnp.float32)

    bound1 = 1.0 / (x1_d ** 0.5)
    bound2 = 1.0 / (x2_d ** 0.5)
    w1 = jax.random.uniform(k3, (hidden, x1_d), jnp.float32, -bound1, bound1)
    w2 = jax.random.uniform(k4, (hidden, x2_d), jnp.float32, -bound2, bound2)
    linear_final = jnp.ones((1, 1, hidden), dtype=jnp.float32)  # similarity_score=False

    ref = attention_score_ref(x1, x2, w1, w2, linear_final)

    # f32 path: tight tolerance.
    out_f32 = jax.block_until_ready(
        attention_score(x1, x2, w1, w2, linear_final, matmul_dtype=jnp.float32))
    assert out_f32.shape == (B, L1, L2)
    assert jnp.allclose(out_f32, ref, atol=1e-4, rtol=1e-4)

    # bf16-input / f32-accumulate path (v6e/v7x MXU fast path): looser tolerance.
    out_bf16 = jax.block_until_ready(
        attention_score(x1, x2, w1, w2, linear_final, matmul_dtype=jnp.bfloat16))
    assert out_bf16.shape == (B, L1, L2)
    assert jnp.allclose(out_bf16, ref, atol=5e-2, rtol=5e-2)

    # Non-128-aligned shapes exercise the pad / tile / slice path.
    kb = jax.random.split(jax.random.PRNGKey(1), 4)
    Bb, L1b, L2b, D1b, D2b, Hb = 2, 40, 24, 48, 56, 72
    x1b = jax.random.normal(kb[0], (Bb, L1b, D1b), dtype=jnp.float32)
    x2b = jax.random.normal(kb[1], (Bb, L2b, D2b), dtype=jnp.float32)
    w1b = jax.random.uniform(kb[2], (Hb, D1b), jnp.float32, -1 / D1b ** 0.5, 1 / D1b ** 0.5)
    w2b = jax.random.uniform(kb[3], (Hb, D2b), jnp.float32, -1 / D2b ** 0.5, 1 / D2b ** 0.5)
    dfb = jax.random.normal(jax.random.PRNGKey(2), (1, 1, Hb), dtype=jnp.float32)
    outb = jax.block_until_ready(
        attention_score(x1b, x2b, w1b, w2b, dfb, matmul_dtype=jnp.float32))
    refb = attention_score_ref(x1b, x2b, w1b, w2b, dfb)
    assert outb.shape == (Bb, L1b, L2b)
    assert jnp.allclose(outb, refb, atol=1e-3, rtol=1e-3)

    print("KERNEL_OK")
</pallas_src>

<mosaic_0001>
module attributes {stable_mosaic.version = 11 : i64} {
  func.func @_proj_relu_kernel(%arg0: i32, %arg1: i32, %arg2: memref<1x128x128xf32, #tpu.memory_space<vmem>>, %arg3: memref<128x128xf32, #tpu.memory_space<vmem>>, %arg4: memref<1x128xf32, #tpu.memory_space<vmem>>, %arg5: memref<1x128x128xf32, #tpu.memory_space<vmem>>) attributes {dimension_semantics = [#tpu.dimension_semantics<parallel>, #tpu.dimension_semantics<parallel>], iteration_bounds = array<i64: 2, 1>, scalar_prefetch = 0 : i64, scratch_operands = 0 : i64, tpu.core_type = #tpu.core_type<tc>, window_params = [{transform_indices = @transform_0, window_bounds = array<i64: 1, 128, 128>}, {pipeline_mode = #tpu.pipeline_mode<synchronous>, transform_indices = @transform_1, window_bounds = array<i64: 128, 128>}, {pipeline_mode = #tpu.pipeline_mode<synchronous>, transform_indices = @transform_2, window_bounds = array<i64: 1, 128>}, {transform_indices = @transform_3, window_bounds = array<i64: 1, 128, 128>}]} {
    %c0 = arith.constant 0 : index
    %c0_0 = arith.constant 0 : index
    %c0_1 = arith.constant 0 : index
    %0 = vector.load %arg2[%c0, %c0_0, %c0_1] : memref<1x128x128xf32, #tpu.memory_space<vmem>>, vector<1x128x128xf32>
    %1 = vector.shape_cast %0 : vector<1x128x128xf32> to vector<128x128xf32>
    %c0_2 = arith.constant 0 : index
    %c0_3 = arith.constant 0 : index
    %2 = vector.load %arg3[%c0_2, %c0_3] : memref<128x128xf32, #tpu.memory_space<vmem>>, vector<128x128xf32>
    %cst = arith.constant dense<0.000000e+00> : vector<128x128xf32>
    %3 = tpu.matmul %1, %2, %cst {dimension_numbers = #tpu.dot_dimension_numbers<[1], [0], [0], [1], [0, 0, 1, 1], [], []>} : vector<128x128xf32>, vector<128x128xf32>, vector<128x128xf32> -> vector<128x128xf32>
    %cst_4 = arith.constant 0.000000e+00 : f32
    %4 = vector.broadcast %cst_4 : f32 to vector<128x128xf32>
    %5 = arith.maximumf %3, %4 : vector<128x128xf32>
    %c0_5 = arith.constant 0 : index
    %c0_6 = arith.constant 0 : index
    %6 = vector.load %arg4[%c0_5, %c0_6] : memref<1x128xf32, #tpu.memory_space<vmem>>, vector<1x128xf32>
    %7 = vector.broadcast %6 : vector<1x128xf32> to vector<128x128xf32>
    %8 = arith.mulf %5, %7 : vector<128x128xf32>
    %c0_7 = arith.constant 0 : index
    %c0_8 = arith.constant 0 : index
    %c0_9 = arith.constant 0 : index
    %9 = vector.load %arg5[%c0_7, %c0_8, %c0_9] : memref<1x128x128xf32, #tpu.memory_space<vmem>>, vector<1x128x128xf32>
    %10 = vector.shape_cast %9 : vector<1x128x128xf32> to vector<128x128xf32>
    %11 = vector.shape_cast %8 : vector<128x128xf32> to vector<1x128x128xf32>
    tpu.vector_store %arg5[%c0_7, %c0_8, %c0_9], %11 {strides = array<i32>} : memref<1x128x128xf32, #tpu.memory_space<vmem>>, vector<1x128x128xf32>,
    return
  }
  func.func @transform_0(%arg0: i32, %arg1: i32) -> (i32, i32, i32) {
    %c0_i32 = arith.constant 0 : i32
    %c0_i32_0 = arith.constant 0 : i32
    return %arg0, %arg1, %c0_i32 : i32, i32, i32
  }
  func.func @transform_1(%arg0: i32, %arg1: i32) -> (i32, i32) {
    %c0_i32 = arith.constant 0 : i32
    %c0_i32_0 = arith.constant 0 : i32
    %c0_i32_1 = arith.constant 0 : i32
    return %c0_i32, %c0_i32_0 : i32, i32
  }
  func.func @transform_2(%arg0: i32, %arg1: i32) -> (i32, i32) {
    %c0_i32 = arith.constant 0 : i32
    %c0_i32_0 = arith.constant 0 : i32
    %c0_i32_1 = arith.constant 0 : i32
    return %c0_i32, %c0_i32_0 : i32, i32
  }
  func.func @transform_3(%arg0: i32, %arg1: i32) -> (i32, i32, i32) {
    %c0_i32 = arith.constant 0 : i32
    %c0_i32_0 = arith.constant 0 : i32
    return %arg0, %arg1, %c0_i32 : i32, i32, i32
  }
}

</mosaic_0001>

<llo_original>
// kernel: tpu_custom_call.1
$region0: #{tpu_custom_call.1}
  #allocation0 [shape = 'u32[]', space=smem, size = 0x4, offset = 0x4, fixed_abs, tag = 'smem constant byte address 0x4 - core index']
  #allocation1 [shape = 'u32[72,128]{1,0:T(1,128)}', space=vmem, size = 0x9000, scoped, tag = 'internal scratch']
  %s0 = inlined_call_operand.hbm [shape: f32[2,128,128], index: 0, kind: input, shape index: {}]
  %s1 = inlined_call_operand.hbm [shape: f32[128,128], index: 1, kind: input, shape index: {}]
  %s2 = inlined_call_operand.vmem [shape: f32[1,128], index: 2, kind: input, shape index: {}]
  %s3 = inlined_call_operand.hbm [shape: f32[2,128,128], index: 3, kind: output, shape index: {}]
  %s4 = sld [smem:[#allocation0]]
  $region53: #{tpu_custom_call.1} parent=0
    _
  %s6 = ssub.s32 1, %s4
  %s7 = scalar_select 0, %s6, %s4
  $region1: #{tpu_custom_call.1} parent=0
    #allocation2 [shape = 'u8[131072]{0}', space=vmem, size = 0x20000, scoped, tag = 'input window, operand 0']
    #allocation3 [shape = 's32[2]{0}', space=sflag, size = 0x8, scoped, tag = 'scoped memory for tpu_custom_call.1']
    #allocation4 [shape = 's32[2]{0}', space=sflag, size = 0x8, scoped, tag = 'scoped memory for tpu_custom_call.1']
    #allocation5 [shape = 'u8[65536]{0}', space=vmem, size = 0x10000, scoped, tag = 'input window, operand 1, single buffered']
    #allocation6 [shape = 's32[1]{0}', space=sflag, size = 0x4, scoped, tag = 'scoped memory for tpu_custom_call.1']
    #allocation7 [shape = 'u8[131072]{0}', space=vmem, size = 0x20000, scoped, tag = 'output window, operand 0']
    %8 = vsyncpa [#allocation3], 0
    %s9 = scalar_lea.sflag [#allocation3], 1
    %10 = vsyncpa %s9, 0
    %11 = vsyncpa [#allocation6], 0
    %12 = vsyncpa [#allocation4], 0
    %s13 = scalar_lea.sflag [#allocation4], 1
    %14 = vsyncpa %s13, 0
    loop: start=0, step=1, limit=4
    $region2: #{tpu_custom_call.1} parent=1 // loop_pre_header
      _
    $region3: #{tpu_custom_call.1} parent=1 // loop_header
      %s16 = sphi 0, %s20
      %p17 = scmp.ge.s32.totalorder %s16, 4
      %s23 = sphi 0, %s35
      %s24 = sphi 0, %s31
      %s25 = sphi 0, %s23
      %s26 = sphi 0, %s24
      %s27 = sphi 0, %s25
      %s28 = sphi 0, %s26
      %s40 = sphi 0, %s42
      %s43 = sphi 0, %s40
      %s44 = sphi 0, %s43
      %s60 = sphi 0, %s44
      %s64 = sphi 0, %s64
      %s66 = sphi 0, %s64
      %s67 = sphi 0, %s66
      %s81 = sphi 0, %s67
      %s85 = sphi 0, %s85
      %s87 = sphi 0, %s85
      %s88 = sphi 0, %s87
      %s102 = sphi 0, %s88
      %s110 = sphi 0, %s112
      %s113 = sphi 0, %s110
      %s114 = sphi 0, %s113
      %s130 = sphi 0, %s114
    $region4: #{tpu_custom_call.1} parent=1 // loop_header_branch
      %19 = sbr.rel (%p17) target = $region8
    $region5: #{tpu_custom_call.1} parent=1 // loop_body
      %s21 = ssub.s32 %s16, 1
      %s22 = ssub.s32 %s16, 2
      %s29 = sadd.s32 1, %s24
      %p30 = scmp.ge.s32.totalorder %s29, 1
      %s31 = scalar_select %p30, 0, %s29
      %s32 = sadd.s32 1, %s23
      %s33 = scalar_select %p30, %s32, %s23
      %p34 = scmp.ge.s32.totalorder %s33, 2
      %s35 = scalar_select %p34, 0, %s33
      %s36 = ssub.s32 %s23, %s35
      %s37 = ssub.s32 %s24, %s31
      %s38 = sor.u32 %s36, %s37
      %p39 = scmp.eq.s32.totalorder %s38, 0
      %s41 = sadd.s32 %s40, 1
      %s42 = scalar_select %p39, %s40, %s41
      %p45 = pneg %p39
      %p46 = scmp.eq.s32.totalorder %s16, 1
      %p47 = por %p45, %p46
      %p48 = scmp.ne.s32.totalorder %s40, %s43
      %p49 = scmp.eq.s32.totalorder %s16, 0
      %p50 = por %p48, %p49
      %p51 = scmp.ne.s32.totalorder %s40, %s43
      %p52 = scmp.eq.s32.totalorder %s21, 1
      %p53 = por %p51, %p52
      %p54 = scmp.ne.s32.totalorder %s43, %s44
      %p55 = scmp.eq.s32.totalorder %s21, 0
      %p56 = por %p54, %p55
      %p57 = scmp.ne.s32.totalorder %s43, %s44
      %p58 = scmp.eq.s32.totalorder %s22, 1
      %p59 = por %p57, %p58
      %p61 = scmp.ne.s32.totalorder %s44, %s60
      %p62 = scmp.eq.s32.totalorder %s22, 0
      %p63 = por %p61, %p62
      %s65 = sadd.s32 %s64, 1
      %p68 = scmp.eq.s32.totalorder %s16, 1
      %p69 = scmp.ne.s32.totalorder %s64, %s66
      %p70 = scmp.eq.s32.totalorder %s16, 0
      %p71 = por %p69, %p70
      %p72 = scmp.ne.s32.totalorder %s64, %s66
      %p73 = scmp.eq.s32.totalorder %s21, 1
      %p74 = por %p72, %p73
      %p75 = scmp.ne.s32.totalorder %s66, %s67
      %p76 = scmp.eq.s32.totalorder %s21, 0
      %p77 = por %p75, %p76
      %p78 = scmp.ne.s32.totalorder %s66, %s67
      %p79 = scmp.eq.s32.totalorder %s22, 1
      %p80 = por %p78, %p79
      %p82 = scmp.ne.s32.totalorder %s67, %s81
      %p83 = scmp.eq.s32.totalorder %s22, 0
      %p84 = por %p82, %p83
      %s86 = sadd.s32 %s85, 1
      %p89 = scmp.eq.s32.totalorder %s16, 1
      %p90 = scmp.ne.s32.totalorder %s85, %s87
      %p91 = scmp.eq.s32.totalorder %s16, 0
      %p92 = por %p90, %p91
      %p93 = scmp.ne.s32.totalorder %s85, %s87
      %p94 = scmp.eq.s32.totalorder %s21, 1
      %p95 = por %p93, %p94
      %p96 = scmp.ne.s32.totalorder %s87, %s88
      %p97 = scmp.eq.s32.totalorder %s21, 0
      %p98 = por %p96, %p97
      %p99 = scmp.ne.s32.totalorder %s87, %s88
      %p100 = scmp.eq.s32.totalorder %s22, 1
      %p101 = por %p99, %p100
      %p103 = scmp.ne.s32.totalorder %s88, %s102
      %p104 = scmp.eq.s32.totalorder %s22, 0
      %p105 = por %p103, %p104
      %s106 = ssub.s32 %s23, %s35
      %s107 = ssub.s32 %s24, %s31
      %s108 = sor.u32 %s106, %s107
      %p109 = scmp.eq.s32.totalorder %s108, 0
      %s111 = sadd.s32 %s110, 1
      %s112 = scalar_select %p109, %s110, %s111
      %p115 = pneg %p109
      %p116 = scmp.eq.s32.totalorder %s16, 1
      %p117 = por %p115, %p116
      %p118 = scmp.ne.s32.totalorder %s110, %s113
      %p119 = scmp.eq.s32.totalorder %s16, 0
      %p120 = por %p118, %p119
      %p121 = scmp.ne.s32.totalorder %s110, %s113
      %p122 = scmp.eq.s32.totalorder %s21, 1
      %p123 = por %p121, %p122
      %p124 = scmp.ne.s32.totalorder %s113, %s114
      %p125 = scmp.eq.s32.totalorder %s21, 0
      %p126 = por %p124, %p125
      %p127 = scmp.ne.s32.totalorder %s113, %s114
      %p128 = scmp.eq.s32.totalorder %s22, 1
      %p129 = por %p127, %p128
      %p131 = scmp.ne.s32.totalorder %s114, %s130
      %p132 = scmp.eq.s32.totalorder %s22, 0
      %p133 = por %p131, %p132
      %p134 = scmp.le.s32.totalorder 1, %s16
      %p135 = scmp.lt.s32.totalorder %s16, 3
      %p136 = pnand %p134, %p135
      %p137 = pneg %p136
      // Predicated region
      $region9: #{tpu_custom_call.1} parent=5 // pred_check
        _
      $region10: #{tpu_custom_call.1} parent=5 // pred_check_branch
        %139 = sbr.rel (%p136) target = $region12
      $region11: #{tpu_custom_call.1} parent=5 // pred_region
        %s140 = ssub.s32 %s16, 1
        // Predicated region
        $region13: #{tpu_custom_call.1} parent=11 // pred_check
          %p141 = pneg %p77
        $region14: #{tpu_custom_call.1} parent=11 // pred_check_branch
          %143 = sbr.rel (%p141) target = $region16
        $region15: #{tpu_custom_call.1} parent=11 // pred_region
          %145 = vsyncadd [#allocation6], 0
          %s146 = sshll.u32 %s1, 4
          %s147 = int_to_ptr.hbm [resolvable:$true] %s146
          %s148 = sshll.u32 [#allocation5], 4
          %s149 = int_to_ptr.vmem [resolvable:$true] %s148
          %154 = dma.hbm_to_vmem [thread:$0]  %s147, 2048, %s149, [#allocation6], 128, 128, 8
        $region16: #{tpu_custom_call.1} parent=11 // pred_fallthru
          _
        // Predicated region
        $region17: #{tpu_custom_call.1} parent=11 // pred_check
          %p155 = pneg %p98
        $region18: #{tpu_custom_call.1} parent=11 // pred_check_branch
          %157 = sbr.rel (%p155) target = $region20
        $region19: #{tpu_custom_call.1} parent=11 // pred_region
          _
        $region20: #{tpu_custom_call.1} parent=11 // pred_fallthru
          _
      $region12: #{tpu_custom_call.1} parent=5 // pred_fallthru
        _
      %p158 = scmp.lt.s32.totalorder %s16, 2
      // Predicated region
      $region21: #{tpu_custom_call.1} parent=5 // pred_check
        %p159 = pneg %p158
      $region22: #{tpu_custom_call.1} parent=5 // pred_check_branch
        %161 = sbr.rel (%p159) target = $region24
      $region23: #{tpu_custom_call.1} parent=5 // pred_region
        // Predicated region
        $region25: #{tpu_custom_call.1} parent=23 // pred_check
          %p162 = pneg %p50
        $region26: #{tpu_custom_call.1} parent=23 // pred_check_branch
          %164 = sbr.rel (%p162) target = $region28
        $region27: #{tpu_custom_call.1} parent=23 // pred_region
          %s165 = sand.u32 %s40, 1
          %s166 = scalar_lea.sflag [#allocation3], %s165
          %s167 = sand.u32 %s40, 1
          %s168 = smul.addr %s167, 128
          %s169 = scalar_lea.vmem [#allocation2], %s168
          %s170 = smul.u32 16, %s24
          %172 = vsyncadd %s166, 0
          %s173 = smul.addr %s23, 16
          %s174 = sadd.s32 %s170, %s173
          %s175 = smul.addr %s174, 8
          %s176 = scalar_lea.hbm %s0, %s175
          %s177 = sshll.u32 %s176, 4
          %s178 = int_to_ptr.hbm [resolvable:$true] %s177
          %s179 = sshll.u32 %s169, 4
          %s180 = int_to_ptr.vmem [resolvable:$true] %s179
          %185 = dma.hbm_to_vmem [thread:$0]  %s178, 2048, %s180, %s166, 128, 128, 8
        $region28: #{tpu_custom_call.1} parent=23 // pred_fallthru
          _
      $region24: #{tpu_custom_call.1} parent=5 // pred_fallthru
        _
      %p186 = scmp.le.s32.totalorder 1, %s16
      %p187 = scmp.lt.s32.totalorder %s16, 3
      %p188 = pnand %p186, %p187
      %p189 = pneg %p188
      // Predicated region
      $region29: #{tpu_custom_call.1} parent=5 // pred_check
        _
      $region30: #{tpu_custom_call.1} parent=5 // pred_check_branch
        %191 = sbr.rel (%p188) target = $region32
      $region31: #{tpu_custom_call.1} parent=5 // pred_region
        %s192 = ssub.s32 %s16, 1
        %s193 = sand.u32 %s43, 1
        %s194 = scalar_lea.sflag [#allocation3], %s193
        %s195 = sand.u32 %s43, 1
        %s196 = smul.addr %s195, 128
        %s197 = scalar_lea.vmem [#allocation2], %s196
        // Predicated region
        $region33: #{tpu_custom_call.1} parent=31 // pred_check
          %p198 = pneg %p56
        $region34: #{tpu_custom_call.1} parent=31 // pred_check_branch
          %200 = sbr.rel (%p198) target = $region36
        $region35: #{tpu_custom_call.1} parent=31 // pred_region
          %202 = dma.done %s194, 2048
        $region36: #{tpu_custom_call.1} parent=31 // pred_fallthru
          _
        // Predicated region
        $region37: #{tpu_custom_call.1} parent=31 // pred_check
          %p203 = pneg %p77
        $region38: #{tpu_custom_call.1} parent=31 // pred_check_branch
          %205 = sbr.rel (%p203) target = $region40
        $region39: #{tpu_custom_call.1} parent=31 // pred_region
          %207 = dma.done [#allocation6], 2048
        $region40: #{tpu_custom_call.1} parent=31 // pred_fallthru
          _
        %s208 = sand.u32 %s43, 1
        %s209 = scalar_lea.sflag [#allocation3], %s208
        %s210 = sand.u32 %s43, 1
        %s211 = smul.addr %s210, 128
        %s212 = scalar_lea.vmem [#allocation2], %s211
        %p213 = pneg %p56
        %p214 = pneg %p53
        %p215 = pneg %p77
        %p216 = pneg %p74
        %p217 = pneg %p98
        %p218 = pneg %p95
        %p219 = pneg %p126
        %p220 = pneg %p123
        %s221 = sand.u32 %s113, 1
        %s222 = scalar_lea.sflag [#allocation4], %s221
        %s223 = sand.u32 %s113, 1
        %s224 = smul.addr %s223, 128
        %s225 = scalar_lea.vmem [#allocation7], %s224
        %s226 = smul.u32 16, %s26
        %s227 = smul.u32 16, %s26
        %v228 = vld [vmem:[%s197] sm:$0xff]
        %v229 = vld [vmem:[%s197 + $0x8] sm:$0xff]
        %v230 = vld [vmem:[%s197 + $0x10] sm:$0xff]
        %v231 = vld [vmem:[%s197 + $0x18] sm:$0xff]
        %v232 = vld [vmem:[%s197 + $0x20] sm:$0xff]
        %v233 = vld [vmem:[%s197 + $0x28] sm:$0xff]
        %v234 = vld [vmem:[%s197 + $0x30] sm:$0xff]
        %v235 = vld [vmem:[%s197 + $0x38] sm:$0xff]
        %v236 = vld [vmem:[%s197 + $0x40] sm:$0xff]
        %v237 = vld [vmem:[%s197 + $0x48] sm:$0xff]
        %v238 = vld [vmem:[%s197 + $0x50] sm:$0xff]
        %v239 = vld [vmem:[%s197 + $0x58] sm:$0xff]
        %v240 = vld [vmem:[%s197 + $0x60] sm:$0xff]
        %v241 = vld [vmem:[%s197 + $0x68] sm:$0xff]
        %v242 = vld [vmem:[%s197 + $0x70] sm:$0xff]
        %v243 = vld [vmem:[%s197 + $0x78] sm:$0xff]
        %v244 = vld [vmem:[#allocation5] sm:$0xff]
        %v245 = vld [vmem:[#allocation5 + $0x8] sm:$0xff]
        %v246 = vld [vmem:[#allocation5 + $0x10] sm:$0xff]
        %v247 = vld [vmem:[#allocation5 + $0x18] sm:$0xff]
        %v248 = vld [vmem:[#allocation5 + $0x20] sm:$0xff]
        %v249 = vld [vmem:[#allocation5 + $0x28] sm:$0xff]
        %v250 = vld [vmem:[#allocation5 + $0x30] sm:$0xff]
        %v251 = vld [vmem:[#allocation5 + $0x38] sm:$0xff]
        %v252 = vld [vmem:[#allocation5 + $0x40] sm:$0xff]
        %v253 = vld [vmem:[#allocation5 + $0x48] sm:$0xff]
        %v254 = vld [vmem:[#allocation5 + $0x50] sm:$0xff]
        %v255 = vld [vmem:[#allocation5 + $0x58] sm:$0xff]
        %v256 = vld [vmem:[#allocation5 + $0x60] sm:$0xff]
        %v257 = vld [vmem:[#allocation5 + $0x68] sm:$0xff]
        %v258 = vld [vmem:[#allocation5 + $0x70] sm:$0xff]
        %v259 = vld [vmem:[#allocation5 + $0x78] sm:$0xff]
        %260 = vmatpush.msra.mxu0 %v259
        %261 = vmatpush.msra.mxu0 %v258
        %262 = vmatpush.msra.mxu0 %v257
        %263 = vmatpush.msra.mxu0 %v256
        %264 = vmatpush.msra.mxu0 %v255
        %265 = vmatpush.msra.mxu0 %v254
        %266 = vmatpush.msra.mxu0 %v253
        %267 = vmatpush.msra.mxu0 %v252
        %268 = vmatpush.msra.mxu0 %v251
        %269 = vmatpush.msra.mxu0 %v250
        %270 = vmatpush.msra.mxu0 %v249
        %271 = vmatpush.msra.mxu0 %v248
        %272 = vmatpush.msra.mxu0 %v247
        %273 = vmatpush.msra.mxu0 %v246
        %274 = vmatpush.msra.mxu0 %v245
        %275 = vmatpush.msra.mxu0 %v244
        %276 = vmatmul.f32.gmra.mxu0 %v228
        %v277 = vpop.f32.mrf.mxu0
        %v278 = vadd.f32 0.0, %v277
        %279 = vmatmul.f32.gmra.mxu0 %v229
        %v280 = vpop.f32.mrf.mxu0
        %v281 = vadd.f32 0.0, %v280
        %282 = vmatmul.f32.gmra.mxu0 %v230
        %v283 = vpop.f32.mrf.mxu0
        %v284 = vadd.f32 0.0, %v283
        %285 = vmatmul.f32.gmra.mxu0 %v231
        %v286 = vpop.f32.mrf.mxu0
        %v287 = vadd.f32 0.0, %v286
        %288 = vmatmul.f32.gmra.mxu0 %v232
        %v289 = vpop.f32.mrf.mxu0
        %v290 = vadd.f32 0.0, %v289
        %291 = vmatmul.f32.gmra.mxu0 %v233
        %v292 = vpop.f32.mrf.mxu0
        %v293 = vadd.f32 0.0, %v292
        %294 = vmatmul.f32.gmra.mxu0 %v234
        %v295 = vpop.f32.mrf.mxu0
        %v296 = vadd.f32 0.0, %v295
        %297 = vmatmul.f32.gmra.mxu0 %v235
        %v298 = vpop.f32.mrf.mxu0
        %v299 = vadd.f32 0.0, %v298
        %300 = vmatmul.f32.gmra.mxu0 %v236
        %v301 = vpop.f32.mrf.mxu0
        %v302 = vadd.f32 0.0, %v301
        %303 = vmatmul.f32.gmra.mxu0 %v237
        %v304 = vpop.f32.mrf.mxu0
        %v305 = vadd.f32 0.0, %v304
        %306 = vmatmul.f32.gmra.mxu0 %v238
        %v307 = vpop.f32.mrf.mxu0
        %v308 = vadd.f32 0.0, %v307
        %309 = vmatmul.f32.gmra.mxu0 %v239
        %v310 = vpop.f32.mrf.mxu0
        %v311 = vadd.f32 0.0, %v310
        %312 = vmatmul.f32.gmra.mxu0 %v240
        %v313 = vpop.f32.mrf.mxu0
        %v314 = vadd.f32 0.0, %v313
        %315 = vmatmul.f32.gmra.mxu0 %v241
        %v316 = vpop.f32.mrf.mxu0
        %v317 = vadd.f32 0.0, %v316
        %318 = vmatmul.f32.gmra.mxu0 %v242
        %v319 = vpop.f32.mrf.mxu0
        %v320 = vadd.f32 0.0, %v319
        %321 = vmatmul.f32.gmra.mxu0 %v243
        %v322 = vpop.f32.mrf.mxu0
        %v323 = vadd.f32 0.0, %v322
        %324 = vdwg.mxu0
        %v325 = vmax.f32 %v278, 0.0
        %v326 = vmax.f32 %v281, 0.0
        %v327 = vmax.f32 %v284, 0.0
        %v328 = vmax.f32 %v287, 0.0
        %v329 = vmax.f32 %v290, 0.0
        %v330 = vmax.f32 %v293, 0.0
        %v331 = vmax.f32 %v296, 0.0
        %v332 = vmax.f32 %v299, 0.0
        %v333 = vmax.f32 %v302, 0.0
        %v334 = vmax.f32 %v305, 0.0
        %v335 = vmax.f32 %v308, 0.0
        %v336 = vmax.f32 %v311, 0.0
        %v337 = vmax.f32 %v314, 0.0
        %v338 = vmax.f32 %v317, 0.0
        %v339 = vmax.f32 %v320, 0.0
        %v340 = vmax.f32 %v323, 0.0
        %v341 = vld [vmem:[%s2] sm:$0x1]
        %v343 = vperm.slane %v341, 0
        %v345 = vmul.f32 %v325, %v343
        %v346 = vmul.f32 %v326, %v343
        %v347 = vmul.f32 %v327, %v343
        %v348 = vmul.f32 %v328, %v343
        %v349 = vmul.f32 %v329, %v343
        %v350 = vmul.f32 %v330, %v343
        %v351 = vmul.f32 %v331, %v343
        %v352 = vmul.f32 %v332, %v343
        %v353 = vmul.f32 %v333, %v343
        %v354 = vmul.f32 %v334, %v343
        %v355 = vmul.f32 %v335, %v343
        %v356 = vmul.f32 %v336, %v343
        %v357 = vmul.f32 %v337, %v343
        %v358 = vmul.f32 %v338, %v343
        %v359 = vmul.f32 %v339, %v343
        %v360 = vmul.f32 %v340, %v343
        %361 = vst [vmem:[%s225] sm:$0xff] %v345
        %362 = vst [vmem:[%s225 + $0x8] sm:$0xff] %v346
        %363 = vst [vmem:[%s225 + $0x10] sm:$0xff] %v347
        %364 = vst [vmem:[%s225 + $0x18] sm:$0xff] %v348
        %365 = vst [vmem:[%s225 + $0x20] sm:$0xff] %v349
        %366 = vst [vmem:[%s225 + $0x28] sm:$0xff] %v350
        %367 = vst [vmem:[%s225 + $0x30] sm:$0xff] %v351
        %368 = vst [vmem:[%s225 + $0x38] sm:$0xff] %v352
        %369 = vst [vmem:[%s225 + $0x40] sm:$0xff] %v353
        %370 = vst [vmem:[%s225 + $0x48] sm:$0xff] %v354
        %371 = vst [vmem:[%s225 + $0x50] sm:$0xff] %v355
        %372 = vst [vmem:[%s225 + $0x58] sm:$0xff] %v356
        %373 = vst [vmem:[%s225 + $0x60] sm:$0xff] %v357
        %374 = vst [vmem:[%s225 + $0x68] sm:$0xff] %v358
        %375 = vst [vmem:[%s225 + $0x70] sm:$0xff] %v359
        %376 = vst [vmem:[%s225 + $0x78] sm:$0xff] %v360
        %s377 = sand.u32 %s113, 1
        %s378 = scalar_lea.sflag [#allocation4], %s377
        %s379 = sand.u32 %s113, 1
        %s380 = smul.addr %s379, 128
        %s381 = scalar_lea.vmem [#allocation7], %s380
        // Predicated region
        $region41: #{tpu_custom_call.1} parent=31 // pred_check
          %p382 = pneg %p123
        $region42: #{tpu_custom_call.1} parent=31 // pred_check_branch
          %384 = sbr.rel (%p382) target = $region44
        $region43: #{tpu_custom_call.1} parent=31 // pred_region
          %s385 = smul.u32 16, %s26
          %387 = vsyncadd %s378, 0
          %s388 = smul.addr %s25, 16
          %s389 = sadd.s32 %s385, %s388
          %s390 = smul.addr %s389, 8
          %s391 = scalar_lea.hbm %s3, %s390
          %s392 = sshll.u32 %s381, 4
          %s393 = int_to_ptr.vmem [resolvable:$true] %s392
          %s394 = sshll.u32 %s391, 4
          %s395 = int_to_ptr.hbm [resolvable:$true] %s394
          %400 = dma.vmem_to_hbm [thread:$0]  %s393, 2048, %s395, %s378, 128, 128, 8
        $region44: #{tpu_custom_call.1} parent=31 // pred_fallthru
          _
      $region32: #{tpu_custom_call.1} parent=5 // pred_fallthru
        _
      %p401 = scmp.le.s32.totalorder 2, %s16
      // Predicated region
      $region45: #{tpu_custom_call.1} parent=5 // pred_check
        %p402 = pneg %p401
      $region46: #{tpu_custom_call.1} parent=5 // pred_check_branch
        %404 = sbr.rel (%p402) target = $region48
      $region47: #{tpu_custom_call.1} parent=5 // pred_region
        %s405 = ssub.s32 %s16, 2
        // Predicated region
        $region49: #{tpu_custom_call.1} parent=47 // pred_check
          %p406 = pneg %p129
        $region50: #{tpu_custom_call.1} parent=47 // pred_check_branch
          %408 = sbr.rel (%p406) target = $region52
        $region51: #{tpu_custom_call.1} parent=47 // pred_region
          %s409 = sand.u32 %s114, 1
          %s410 = scalar_lea.sflag [#allocation4], %s409
          %s411 = sand.u32 %s114, 1
          %s412 = smul.addr %s411, 128
          %s413 = scalar_lea.vmem [#allocation7], %s412
          %415 = dma.done %s410, 2048
        $region52: #{tpu_custom_call.1} parent=47 // pred_fallthru
          _
      $region48: #{tpu_custom_call.1} parent=5 // pred_fallthru
        _
    $region6: #{tpu_custom_call.1} parent=1 // loop_footer
      %s20 = sadd.s32 1, %s16
    $region7: #{tpu_custom_call.1} parent=1 // loop_footer_branch
      %15 = sbr.rel target = $region3
    $region8: #{tpu_custom_call.1} parent=1 // loop_exit
      _
    %416 = vsyncpa [#allocation3], 1
    %s417 = scalar_lea.sflag [#allocation3], 1
    %418 = vsyncpa %s417, 1
    %419 = vsyncpa [#allocation6], 1
    %420 = vsyncpa [#allocation4], 1
    %s421 = scalar_lea.sflag [#allocation4], 1
    %422 = vsyncpa %s421, 1

</llo_original>
